<compile_context>
chip_gen: v6e
topology: v6e:2x2x1
jax: 0.10.0
libtpu: 0.0.40
codegen_flags: <defaults>
</compile_context>

<pallas_src>
import functools

import jax
import jax.numpy as jnp
from jax.experimental import pallas as pl
from jax.experimental.pallas import tpu as pltpu


def _fcgr_kernel(x_ref, w_ref, p_ref, mred_ref, mbc_ref, o_ref, acc_ref, *, eps):
    """Grid = (row_block i [parallel], k_block k [arbitrary, reduction])."""
    k = pl.program_id(1)

    # ---- init accumulator at the start of each K sweep --------------------------------
    @pl.when(k == 0)
    def _():
        acc_ref[...] = jnp.zeros_like(acc_ref)

    # ---- Linear partial: (tn, tk)bf16 @ (tk, C)bf16 -> f32 accumulate -----------------
    acc_ref[...] += jnp.dot(x_ref[...], w_ref[...],
                            preferred_element_type=jnp.float32)

    # ---- epilogue on the last K slab: bias + GroupNorm + ReLU -------------------------
    @pl.when(k == pl.num_programs(1) - 1)
    def _():
        y = acc_ref[...] + p_ref[0:1, :]                    # + bias, f32  (tn, C)

        # Per-row, per-group stats via matmuls against the pre-scaled one-hot matrix.
        # Same RHS for both -> it stays in the MXU weight regs; no (2*tn, C) concat copy.
        mean = jnp.dot(y, mred_ref[...], preferred_element_type=jnp.float32)      # (tn, G)
        ey2 = jnp.dot(y * y, mred_ref[...], preferred_element_type=jnp.float32)   # (tn, G)
        var = jnp.maximum(ey2 - mean * mean, 0.0)           # clamp one-pass cancellation
        inv_std = jax.lax.rsqrt(var + eps)

        # Broadcast back to channels; gamma already folded into mbc_ref columns.
        scale_c = jnp.dot(inv_std, mbc_ref[...],
                          preferred_element_type=jnp.float32)                     # (tn, C)
        shift_c = jnp.dot(-(mean * inv_std), mbc_ref[...],
                          preferred_element_type=jnp.float32)                     # (tn, C)

        out = y * scale_c + shift_c + p_ref[1:2, :]         # + beta
        o_ref[...] = jnp.maximum(out, 0.0).astype(o_ref.dtype)


def _pick_k_tile(K):
    """Stream W in (tk, C) slabs; full K when small (tk must be a multiple of 128 or == K)."""
    if K <= 2048:
        return K
    for tk in (2048, 1536, 1024, 768, 512, 384, 256, 128):
        if K % tk == 0:
            return tk
    return K


def _pick_row_tile(N, C, tk):
    """Largest row tile that divides N, fits the VMEM working-set budget, and (when N
    allows) leaves >= 2 row blocks so the 'parallel' axis shards across v7x's 2 TCs."""
    candidates = [t for t in (1024, 512, 256, 128, 64, 32, 16, 8) if t <= N and N % t == 0]
    if not candidates:
        return N  # N not a multiple of 8: single full block (correct, may relayout)

    budget = 40 << 20  # leave headroom under v7x's 64 MiB physical VMEM

    def working_set(tn):
        return (2 * tn * tk * 2      # x slab, double-buffered bf16
                + 2 * tk * C * 2     # W slab, double-buffered bf16
                + 2 * tn * C * 4     # output block, double-buffered f32
                + tn * C * 4         # f32 accumulator scratch
                + 4 * tn * C * 4)    # epilogue temporaries (y, y*y, scale, shift)

    fitting = [t for t in candidates if working_set(t) <= budget]
    tn = fitting[0] if fitting else candidates[-1]
    if N // tn < 2:  # prefer >= 2 row blocks for megacore when possible
        smaller = [t for t in candidates if t < tn and N // t >= 2]
        if smaller:
            tn = smaller[0]
    return tn


def fcgr_forward(x, w_t, b, gamma, beta, num_groups, eps=1e-5):
    """x: (N, K); w_t: (K, C) (transposed Linear weight); b/gamma/beta: (C,)."""
    N, K = x.shape
    C = w_t.shape[1]
    G = num_groups
    assert C % G == 0
    group_size = C // G

    # bf16 on the MXU path (all generations are bf16-native); stats stay f32 in-kernel.
    x_lo = x.astype(jnp.bfloat16)
    w_lo = w_t.astype(jnp.bfloat16)

    # Packed per-channel params: [bias; beta] (gamma is folded into the broadcast matrix).
    params = jnp.stack([b, beta], axis=0).astype(jnp.float32)                    # (2, C)

    # Hoisted one-hot group matrices (built once outside the kernel, resident in VMEM):
    #   m_reduce (C, G): one-hot / group_size  ->  y @ m_reduce = per-group mean
    #   m_bcast  (G, C): one-hot * gamma       ->  folds the affine scale into the matmul
    grp = jnp.arange(C, dtype=jnp.int32) // group_size
    gid = jnp.arange(G, dtype=jnp.int32)
    m_reduce = (grp[:, None] == gid[None, :]).astype(jnp.float32) / float(group_size)
    m_bcast = (gid[:, None] == grp[None, :]).astype(jnp.float32) * gamma[None, :].astype(jnp.float32)

    tk = _pick_k_tile(K)
    tn = _pick_row_tile(N, C, tk)
    assert N % tn == 0 or tn == N
    n_rows = N // tn if N % tn == 0 else 1
    n_k = K // tk if K % tk == 0 else 1

    # Explicit scoped-VMEM limit (defaults are 16/32 MiB); floor 32 MiB, cap 64 MiB (v7x).
    est = (2 * tn * tk * 2 + 2 * tk * C * 2 + 2 * tn * C * 4 + tn * C * 4
           + 2 * (2 * C + C * G + G * C) * 4 + 6 * tn * C * 4)
    vmem_limit = int(min(64 << 20, max(32 << 20, 2 * est)))

    # Advisory cost estimate for the surrounding XLA scheduler (includes output write-back).
    flops = 2 * N * K * C + 4 * N * C * G + 4 * N * G * C + 10 * N * C
    w_bytes = K * C * 2 * (n_rows if n_k > 1 else 1)   # W re-streamed per row block if K-tiled
    cost = pl.CostEstimate(
        flops=flops,
        transcendentals=N * G,
        bytes_accessed=N * K * 2 + w_bytes + (2 * C + 2 * C * G) * 4 + N * C * 4)

    kernel = functools.partial(_fcgr_kernel, eps=eps)

    return pl.pallas_call(
        kernel,
        out_shape=jax.ShapeDtypeStruct((N, C), jnp.float32),
        grid_spec=pltpu.PrefetchScalarGridSpec(
            num_scalar_prefetch=0,
            grid=(n_rows, n_k),
            in_specs=[
                pl.BlockSpec((tn, tk), lambda i, k: (i, k)),   # x slab (bf16)
                pl.BlockSpec((tk, C), lambda i, k: (k, 0)),    # W slab (bf16), streamed over K
                pl.BlockSpec((2, C), lambda i, k: (0, 0)),     # [bias; beta], resident
                pl.BlockSpec((C, G), lambda i, k: (0, 0)),     # reduce one-hot, resident
                pl.BlockSpec((G, C), lambda i, k: (0, 0)),     # bcast one-hot * gamma, resident
            ],
            out_specs=pl.BlockSpec((tn, C), lambda i, k: (i, 0)),
            scratch_shapes=[pltpu.VMEM((tn, C), jnp.float32)],  # f32 Linear accumulator
        ),
        compiler_params=pltpu.CompilerParams(
            dimension_semantics=("parallel", "arbitrary"),
            vmem_limit_bytes=vmem_limit),
        cost_estimate=cost,
    )(x_lo, w_lo, params, m_reduce, m_bcast)


def fcgr_reference(x, w_t, b, gamma, beta, num_groups, eps=1e-5):
    y = x @ w_t + b
    N, C = y.shape
    g = y.reshape(N, num_groups, C // num_groups)
    mean = g.mean(axis=-1, keepdims=True)
    var = ((g - mean) ** 2).mean(axis=-1, keepdims=True)
    yn = ((g - mean) / jnp.sqrt(var + eps)).reshape(N, C)
    return jnp.maximum(yn * gamma + beta, 0.0)


if __name__ == "__main__":
    # Small shapes consistent with the module: Linear(in=32, out=128), GroupNorm(32, 128), ReLU.
    N, K, C, G = 8, 32, 128, 32

    key = jax.random.PRNGKey(0)
    kx, kw, kb = jax.random.split(key, 3)

    x = jax.random.normal(kx, (N, K), dtype=jnp.float32)

    # Deterministic parameter init mirroring PyTorch defaults:
    #   Linear: U(-1/sqrt(K), 1/sqrt(K));  GroupNorm: gamma=1, beta=0.
    bound = 1.0 / (K ** 0.5)
    w = jax.random.uniform(kw, (C, K), minval=-bound, maxval=bound, dtype=jnp.float32)
    b = jax.random.uniform(kb, (C,), minval=-bound, maxval=bound, dtype=jnp.float32)
    gamma = jnp.ones((C,), dtype=jnp.float32)
    beta = jnp.zeros((C,), dtype=jnp.float32)

    w_t = w.T  # (K, C)

    out = fcgr_forward(x, w_t, b, gamma, beta, num_groups=G)
    out = jax.block_until_ready(out)

    # Reference computed with the same bf16-rounded Linear inputs (the kernel casts x/W to
    # bf16 on the MXU path), so the check isolates kernel correctness from the dtype policy.
    x_r = x.astype(jnp.bfloat16).astype(jnp.float32)
    w_r = w_t.astype(jnp.bfloat16).astype(jnp.float32)
    ref = fcgr_reference(x_r, w_r, b, gamma, beta, num_groups=G)

    assert out.shape == (N, C)
    err = jnp.max(jnp.abs(out - ref))
    assert jnp.allclose(out, ref, atol=1e-3, rtol=1e-3), f"max err {err}"

    print("KERNEL_OK")
</pallas_src>

<mosaic_0001>
module attributes {stable_mosaic.version = 11 : i64} {
  func.func @_fcgr_kernel(%arg0: i32, %arg1: i32, %arg2: memref<8x32xbf16, #tpu.memory_space<vmem>>, %arg3: memref<32x128xbf16, #tpu.memory_space<vmem>>, %arg4: memref<2x128xf32, #tpu.memory_space<vmem>>, %arg5: memref<128x32xf32, #tpu.memory_space<vmem>>, %arg6: memref<32x128xf32, #tpu.memory_space<vmem>>, %arg7: memref<8x128xf32, #tpu.memory_space<vmem>>, %arg8: memref<8x128xf32, #tpu.memory_space<vmem>>) attributes {dimension_semantics = [#tpu.dimension_semantics<parallel>, #tpu.dimension_semantics<arbitrary>], iteration_bounds = array<i64: 1, 1>, scalar_prefetch = 0 : i64, scratch_operands = 1 : i64, tpu.core_type = #tpu.core_type<tc>, window_params = [{transform_indices = @transform_0, window_bounds = array<i64: 8, 32>}, {transform_indices = @transform_1, window_bounds = array<i64: 32, 128>}, {pipeline_mode = #tpu.pipeline_mode<synchronous>, transform_indices = @transform_2, window_bounds = array<i64: 2, 128>}, {pipeline_mode = #tpu.pipeline_mode<synchronous>, transform_indices = @transform_3, window_bounds = array<i64: 128, 32>}, {pipeline_mode = #tpu.pipeline_mode<synchronous>, transform_indices = @transform_4, window_bounds = array<i64: 32, 128>}, {transform_indices = @transform_5, window_bounds = array<i64: 8, 128>}]} {
    %c0_i32 = arith.constant 0 : i32
    %0 = arith.cmpi eq, %arg1, %c0_i32 : i32
    %1 = arith.extui %0 : i1 to i32
    %c0_i32_0 = arith.constant 0 : i32
    %2 = arith.cmpi ne, %1, %c0_i32_0 : i32
    scf.if %2 {
      %cst_10 = arith.constant 0.000000e+00 : f32
      %12 = vector.broadcast %cst_10 : f32 to vector<8x128xf32>
      %c0_11 = arith.constant 0 : index
      %c0_12 = arith.constant 0 : index
      %13 = vector.load %arg8[%c0_11, %c0_12] : memref<8x128xf32, #tpu.memory_space<vmem>>, vector<8x128xf32>
      tpu.vector_store %arg8[%c0_11, %c0_12], %12 {strides = array<i32>} : memref<8x128xf32, #tpu.memory_space<vmem>>, vector<8x128xf32>,
    } else {
    }
    %c0 = arith.constant 0 : index
    %c0_1 = arith.constant 0 : index
    %3 = vector.load %arg8[%c0, %c0_1] : memref<8x128xf32, #tpu.memory_space<vmem>>, vector<8x128xf32>
    %c0_2 = arith.constant 0 : index
    %c0_3 = arith.constant 0 : index
    %4 = vector.load %arg2[%c0_2, %c0_3] : memref<8x32xbf16, #tpu.memory_space<vmem>>, vector<8x32xbf16>
    %c0_4 = arith.constant 0 : index
    %c0_5 = arith.constant 0 : index
    %5 = vector.load %arg3[%c0_4, %c0_5] : memref<32x128xbf16, #tpu.memory_space<vmem>>, vector<32x128xbf16>
    %cst = arith.constant dense<0.000000e+00> : vector<8x128xf32>
    %6 = tpu.matmul %4, %5, %cst {dimension_numbers = #tpu.dot_dimension_numbers<[1], [0], [0], [1], [0, 0, 1, 1], [], []>} : vector<8x32xbf16>, vector<32x128xbf16>, vector<8x128xf32> -> vector<8x128xf32>
    %7 = arith.addf %3, %6 : vector<8x128xf32>
    %c0_6 = arith.constant 0 : index
    %c0_7 = arith.constant 0 : index
    %8 = vector.load %arg8[%c0_6, %c0_7] : memref<8x128xf32, #tpu.memory_space<vmem>>, vector<8x128xf32>
    tpu.vector_store %arg8[%c0_6, %c0_7], %7 {strides = array<i32>} : memref<8x128xf32, #tpu.memory_space<vmem>>, vector<8x128xf32>,
    %c0_i32_8 = arith.constant 0 : i32
    %9 = arith.cmpi eq, %arg1, %c0_i32_8 : i32
    %10 = arith.extui %9 : i1 to i32
    %c0_i32_9 = arith.constant 0 : i32
    %11 = arith.cmpi ne, %10, %c0_i32_9 : i32
    scf.if %11 {
      %c0_10 = arith.constant 0 : index
      %c0_11 = arith.constant 0 : index
      %12 = vector.load %arg8[%c0_10, %c0_11] : memref<8x128xf32, #tpu.memory_space<vmem>>, vector<8x128xf32>
      %c0_12 = arith.constant 0 : index
      %c0_13 = arith.constant 0 : index
      %13 = vector.load %arg4[%c0_12, %c0_13] : memref<2x128xf32, #tpu.memory_space<vmem>>, vector<1x128xf32>
      %14 = vector.broadcast %13 : vector<1x128xf32> to vector<8x128xf32>
      %15 = arith.addf %12, %14 : vector<8x128xf32>
      %c0_14 = arith.constant 0 : index
      %c0_15 = arith.constant 0 : index
      %16 = vector.load %arg5[%c0_14, %c0_15] : memref<128x32xf32, #tpu.memory_space<vmem>>, vector<128x32xf32>
      %cst_16 = arith.constant dense<0.000000e+00> : vector<8x32xf32>
      %17 = tpu.matmul %15, %16, %cst_16 {dimension_numbers = #tpu.dot_dimension_numbers<[1], [0], [0], [1], [0, 0, 1, 1], [], []>} : vector<8x128xf32>, vector<128x32xf32>, vector<8x32xf32> -> vector<8x32xf32>
      %18 = arith.mulf %15, %15 : vector<8x128xf32>
      %c0_17 = arith.constant 0 : index
      %c0_18 = arith.constant 0 : index
      %19 = vector.load %arg5[%c0_17, %c0_18] : memref<128x32xf32, #tpu.memory_space<vmem>>, vector<128x32xf32>
      %cst_19 = arith.constant dense<0.000000e+00> : vector<8x32xf32>
      %20 = tpu.matmul %18, %19, %cst_19 {dimension_numbers = #tpu.dot_dimension_numbers<[1], [0], [0], [1], [0, 0, 1, 1], [], []>} : vector<8x128xf32>, vector<128x32xf32>, vector<8x32xf32> -> vector<8x32xf32>
      %21 = arith.mulf %17, %17 : vector<8x32xf32>
      %22 = arith.subf %20, %21 : vector<8x32xf32>
      %cst_20 = arith.constant 0.000000e+00 : f32
      %23 = vector.broadcast %cst_20 : f32 to vector<8x32xf32>
      %24 = arith.maximumf %22, %23 : vector<8x32xf32>
      %cst_21 = arith.constant 9.99999974E-6 : f32
      %25 = vector.broadcast %cst_21 : f32 to vector<8x32xf32>
      %26 = arith.addf %24, %25 : vector<8x32xf32>
      %27 = math.rsqrt %26 : vector<8x32xf32>
      %c0_22 = arith.constant 0 : index
      %c0_23 = arith.constant 0 : index
      %28 = vector.load %arg6[%c0_22, %c0_23] : memref<32x128xf32, #tpu.memory_space<vmem>>, vector<32x128xf32>
      %cst_24 = arith.constant dense<0.000000e+00> : vector<8x128xf32>
      %29 = tpu.matmul %27, %28, %cst_24 {dimension_numbers = #tpu.dot_dimension_numbers<[1], [0], [0], [1], [0, 0, 1, 1], [], []>} : vector<8x32xf32>, vector<32x128xf32>, vector<8x128xf32> -> vector<8x128xf32>
      %30 = arith.mulf %17, %27 : vector<8x32xf32>
      %cst_25 = arith.constant 0.000000e+00 : f32
      %31 = vector.broadcast %cst_25 : f32 to vector<8x32xf32>
      %32 = arith.subf %31, %30 : vector<8x32xf32>
      %c0_26 = arith.constant 0 : index
      %c0_27 = arith.constant 0 : index
      %33 = vector.load %arg6[%c0_26, %c0_27] : memref<32x128xf32, #tpu.memory_space<vmem>>, vector<32x128xf32>
      %cst_28 = arith.constant dense<0.000000e+00> : vector<8x128xf32>
      %34 = tpu.matmul %32, %33, %cst_28 {dimension_numbers = #tpu.dot_dimension_numbers<[1], [0], [0], [1], [0, 0, 1, 1], [], []>} : vector<8x32xf32>, vector<32x128xf32>, vector<8x128xf32> -> vector<8x128xf32>
      %35 = arith.mulf %15, %29 : vector<8x128xf32>
      %36 = arith.addf %35, %34 : vector<8x128xf32>
      %c1 = arith.constant 1 : index
      %c0_29 = arith.constant 0 : index
      %37 = vector.load %arg4[%c1, %c0_29] : memref<2x128xf32, #tpu.memory_space<vmem>>, vector<1x128xf32>
      %38 = vector.broadcast %37 : vector<1x128xf32> to vector<8x128xf32>
      %39 = arith.addf %36, %38 : vector<8x128xf32>
      %cst_30 = arith.constant 0.000000e+00 : f32
      %40 = vector.broadcast %cst_30 : f32 to vector<8x128xf32>
      %41 = arith.maximumf %39, %40 : vector<8x128xf32>
      %c0_31 = arith.constant 0 : index
      %c0_32 = arith.constant 0 : index
      %42 = vector.load %arg7[%c0_31, %c0_32] : memref<8x128xf32, #tpu.memory_space<vmem>>, vector<8x128xf32>
      tpu.vector_store %arg7[%c0_31, %c0_32], %41 {strides = array<i32>} : memref<8x128xf32, #tpu.memory_space<vmem>>, vector<8x128xf32>,
    } else {
    }
    return
  }
  func.func @transform_0(%arg0: i32, %arg1: i32) -> (i32, i32) {
    %c0_i32 = arith.constant 0 : i32
    return %arg0, %arg1 : i32, i32
  }
  func.func @transform_1(%arg0: i32, %arg1: i32) -> (i32, i32) {
    %c0_i32 = arith.constant 0 : i32
    %c0_i32_0 = arith.constant 0 : i32
    return %arg1, %c0_i32 : i32, i32
  }
  func.func @transform_2(%arg0: i32, %arg1: i32) -> (i32, i32) {
    %c0_i32 = arith.constant 0 : i32
    %c0_i32_0 = arith.constant 0 : i32
    %c0_i32_1 = arith.constant 0 : i32
    return %c0_i32, %c0_i32_0 : i32, i32
  }
  func.func @transform_3(%arg0: i32, %arg1: i32) -> (i32, i32) {
    %c0_i32 = arith.constant 0 : i32
    %c0_i32_0 = arith.constant 0 : i32
    %c0_i32_1 = arith.constant 0 : i32
    return %c0_i32, %c0_i32_0 : i32, i32
  }
  func.func @transform_4(%arg0: i32, %arg1: i32) -> (i32, i32) {
    %c0_i32 = arith.constant 0 : i32
    %c0_i32_0 = arith.constant 0 : i32
    %c0_i32_1 = arith.constant 0 : i32
    return %c0_i32, %c0_i32_0 : i32, i32
  }
  func.func @transform_5(%arg0: i32, %arg1: i32) -> (i32, i32) {
    %c0_i32 = arith.constant 0 : i32
    %c0_i32_0 = arith.constant 0 : i32
    return %arg0, %c0_i32 : i32, i32
  }
}

</mosaic_0001>

<llo_original>
// kernel: tpu_custom_call.1
$region0: #{tpu_custom_call.1}
  #allocation0 [shape = 'u32[]', space=smem, size = 0x4, offset = 0x4, fixed_abs, tag = 'smem constant byte address 0x4 - core index']
  #allocation1 [shape = 'u32[144,128]{1,0:T(1,128)}', space=vmem, size = 0x12000, scoped, tag = 'internal scratch']
  #allocation2 [shape = 'f32[8,128]{1,0:T(8,128)}', space=vmem, size = 0x1000, scoped, tag = 'scratch operand']
  %s0 = inlined_call_operand.vmem [shape: bf16[8,32], index: 0, kind: input, shape index: {}]
  %s1 = inlined_call_operand.vmem [shape: bf16[32,128], index: 1, kind: input, shape index: {}]
  %s2 = inlined_call_operand.vmem [shape: f32[2,128], index: 2, kind: input, shape index: {}]
  %s3 = inlined_call_operand.vmem [shape: f32[128,32], index: 3, kind: input, shape index: {}]
  %s4 = inlined_call_operand.vmem [shape: f32[32,128], index: 4, kind: input, shape index: {}]
  %s5 = inlined_call_operand.hbm [shape: f32[8,128], index: 5, kind: output, shape index: {}]
  %s6 = sld [smem:[#allocation0]]
  $region38: #{tpu_custom_call.1} parent=0
    _
  %s8 = ssub.s32 1, %s6
  %s9 = scalar_select 0, %s8, %s6
  $region1: #{tpu_custom_call.1} parent=0
    #allocation3 [shape = 'u8[4096]{0}', space=vmem, size = 0x1000, scoped, tag = 'output window, operand 0, single buffered']
    #allocation4 [shape = 's32[1]{0}', space=sflag, size = 0x4, scoped, tag = 'scoped memory for tpu_custom_call.1']
    %10 = vsyncpa [#allocation4], 0
    // Predicated region
    $region2: #{tpu_custom_call.1} parent=1 // pred_check
      _
    $region3: #{tpu_custom_call.1} parent=1 // pred_check_branch
      %12 = sbr.rel (0) target = $region5
    $region4: #{tpu_custom_call.1} parent=1 // pred_region
      _
    $region5: #{tpu_custom_call.1} parent=1 // pred_fallthru
      _
    // Predicated region
    $region6: #{tpu_custom_call.1} parent=1 // pred_check
      _
    $region7: #{tpu_custom_call.1} parent=1 // pred_check_branch
      %14 = sbr.rel (0) target = $region9
    $region8: #{tpu_custom_call.1} parent=1 // pred_region
      _
    $region9: #{tpu_custom_call.1} parent=1 // pred_fallthru
      _
    // Predicated region
    $region10: #{tpu_custom_call.1} parent=1 // pred_check
      _
    $region11: #{tpu_custom_call.1} parent=1 // pred_check_branch
      %16 = sbr.rel (0) target = $region13
    $region12: #{tpu_custom_call.1} parent=1 // pred_region
      _
    $region13: #{tpu_custom_call.1} parent=1 // pred_fallthru
      _
    // Predicated region
    $region14: #{tpu_custom_call.1} parent=1 // pred_check
      _
    $region15: #{tpu_custom_call.1} parent=1 // pred_check_branch
      %18 = sbr.rel (0) target = $region17
    $region16: #{tpu_custom_call.1} parent=1 // pred_region
      _
    $region17: #{tpu_custom_call.1} parent=1 // pred_fallthru
      _
    // Predicated region
    $region18: #{tpu_custom_call.1} parent=1 // pred_check
      _
    $region19: #{tpu_custom_call.1} parent=1 // pred_check_branch
      %20 = sbr.rel (0) target = $region21
    $region20: #{tpu_custom_call.1} parent=1 // pred_region
      _
    $region21: #{tpu_custom_call.1} parent=1 // pred_fallthru
      _
    %p22 = scmp.eq.s32.totalorder 0, 0
    // Predicated region
    $region22: #{tpu_custom_call.1} parent=1 // pred_check
      %p23 = pneg %p22
    $region23: #{tpu_custom_call.1} parent=1 // pred_check_branch
      %25 = sbr.rel (%p23) target = $region25
    $region24: #{tpu_custom_call.1} parent=1 // pred_region
      %26 = vst [vmem:[#allocation2] sm:$0xff] 0.0
    $region25: #{tpu_custom_call.1} parent=1 // pred_fallthru
      _
    %v27 = vld [vmem:[#allocation2] sm:$0xff]
    %v28 = vld [vmem:[%s0] sm:$0xf]
    %v29 = vld [vmem:[%s1] sm:$0xf]
    %v30 = vld [vmem:[%s1 + $0x4] sm:$0xf]
    %v31 = vld [vmem:[%s1 + $0x8] sm:$0xf]
    %v32 = vld [vmem:[%s1 + $0xc] sm:$0xf]
    %v37 = vunpack.c.l.b16 %v29
    %v38 = vunpack.c.l.b16 %v30
    %v39 = vunpack.c.l.b16 %v31
    %v40 = vunpack.c.l.b16 %v32
    %v41 = vpack.c.b16 %v38, %v37
    %v42 = vpack.c.b16 %v40, %v39
    %vm45 = vcmask 261120
    %v47 = vsel %vm45, %v28, 0
    %49 = vmatprep.subr.bf16.mxu0 0
    %50 = vmatpush1.bf16.msra.mxu0 0
    %51 = vmatprep.subr.bf16.mxu0 0
    %52 = vmatpush1.bf16.msra.mxu0 0
    %53 = vmatprep.subr.bf16.mxu0 0
    %54 = vmatpush1.bf16.msra.mxu0 0
    %55 = vmatprep.subr.bf16.mxu0 0
    %56 = vmatpush1.bf16.msra.mxu0 0
    %57 = vmatprep.subr.bf16.mxu0 0
    %58 = vmatpush1.bf16.msra.mxu0 0
    %59 = vmatprep.subr.bf16.mxu0 0
    %60 = vmatpush1.bf16.msra.mxu0 0
    %61 = vmatprep.subr.bf16.mxu0 0
    %62 = vmatpush1.bf16.msra.mxu0 %v42
    %63 = vmatprep.subr.bf16.mxu0 0
    %64 = vmatpush1.bf16.msra.mxu0 %v41
    %65 = vmatprep.subr.bf16.mxu0 0
    %66 = vmatpush2.bf16.msra.mxu0 0
    %67 = vmatprep.subr.bf16.mxu0 0
    %68 = vmatpush2.bf16.msra.mxu0 0
    %69 = vmatprep.subr.bf16.mxu0 0
    %70 = vmatpush2.bf16.msra.mxu0 0
    %71 = vmatprep.subr.bf16.mxu0 0
    %72 = vmatpush2.bf16.msra.mxu0 0
    %73 = vmatprep.subr.bf16.mxu0 0
    %74 = vmatpush2.bf16.msra.mxu0 0
    %75 = vmatprep.subr.bf16.mxu0 0
    %76 = vmatpush2.bf16.msra.mxu0 0
    %77 = vmatprep.subr.bf16.mxu0 0
    %78 = vmatpush2.bf16.msra.mxu0 0
    %79 = vmatprep.subr.bf16.mxu0 0
    %80 = vmatpush2.bf16.msra.mxu0 0
    %81 = vmatprep.mubr.bf16.mxu0 0
    %82 = vmatmul.mubr.bf16.gmra.mxu0 %v47
    %v83 = vpop.f32.mrf.mxu0
    %v84 = vadd.f32 0.0, %v83
    %v85 = vpop.f32.mrf.mxu0
    %v86 = vpop.f32.mrf.mxu0
    %v87 = vpop.f32.mrf.mxu0
    %88 = vdwg.mxu0
    %v89 = vadd.f32 %v27, %v84
    %90 = vst [vmem:[#allocation2] sm:$0xff] %v89
    // Predicated region
    $region26: #{tpu_custom_call.1} parent=1 // pred_check
      %p91 = pneg %p22
    $region27: #{tpu_custom_call.1} parent=1 // pred_check_branch
      %93 = sbr.rel (%p91) target = $region29
    $region28: #{tpu_custom_call.1} parent=1 // pred_region
      %v94 = vld [vmem:[#allocation2] sm:$0xff]
      %v95 = vld [vmem:[%s2] sm:$0x1]
      %v96 = vlaneseq
      %v97 = vshrl.u32 %v96, 7
      %v98 = vsub.s32 0, %v97
      %v99 = vrot.slane %v95, %v98
      %v100 = vadd.f32 %v94, %v99
      %v101 = vld [vmem:[%s3] sm:$0xff]
      %v102 = vld [vmem:[%s3 + $0x8] sm:$0xff]
      %v103 = vld [vmem:[%s3 + $0x10] sm:$0xff]
      %v104 = vld [vmem:[%s3 + $0x18] sm:$0xff]
      %v105 = vld [vmem:[%s3 + $0x20] sm:$0xff]
      %v106 = vld [vmem:[%s3 + $0x28] sm:$0xff]
      %v107 = vld [vmem:[%s3 + $0x30] sm:$0xff]
      %v108 = vld [vmem:[%s3 + $0x38] sm:$0xff]
      %v109 = vld [vmem:[%s3 + $0x40] sm:$0xff]
      %v110 = vld [vmem:[%s3 + $0x48] sm:$0xff]
      %v111 = vld [vmem:[%s3 + $0x50] sm:$0xff]
      %v112 = vld [vmem:[%s3 + $0x58] sm:$0xff]
      %v113 = vld [vmem:[%s3 + $0x60] sm:$0xff]
      %v114 = vld [vmem:[%s3 + $0x68] sm:$0xff]
      %v115 = vld [vmem:[%s3 + $0x70] sm:$0xff]
      %v116 = vld [vmem:[%s3 + $0x78] sm:$0xff]
      %117 = vmatprep.subr.mxu0 0.0
      %118 = vmatpush1.msra.mxu0 %v116
      %119 = vmatprep.subr.mxu0 0.0
      %120 = vmatpush1.msra.mxu0 %v115
      %121 = vmatprep.subr.mxu0 0.0
      %122 = vmatpush1.msra.mxu0 %v114
      %123 = vmatprep.subr.mxu0 0.0
      %124 = vmatpush1.msra.mxu0 %v113
      %125 = vmatprep.subr.mxu0 0.0
      %126 = vmatpush1.msra.mxu0 %v112
      %127 = vmatprep.subr.mxu0 0.0
      %128 = vmatpush1.msra.mxu0 %v111
      %129 = vmatprep.subr.mxu0 0.0
      %130 = vmatpush1.msra.mxu0 %v110
      %131 = vmatprep.subr.mxu0 0.0
      %132 = vmatpush1.msra.mxu0 %v109
      %133 = vmatprep.subr.mxu0 0.0
      %134 = vmatpush1.msra.mxu0 %v108
      %135 = vmatprep.subr.mxu0 0.0
      %136 = vmatpush1.msra.mxu0 %v107
      %137 = vmatprep.subr.mxu0 0.0
      %138 = vmatpush1.msra.mxu0 %v106
      %139 = vmatprep.subr.mxu0 0.0
      %140 = vmatpush1.msra.mxu0 %v105
      %141 = vmatprep.subr.mxu0 0.0
      %142 = vmatpush1.msra.mxu0 %v104
      %143 = vmatprep.subr.mxu0 0.0
      %144 = vmatpush1.msra.mxu0 %v103
      %145 = vmatprep.subr.mxu0 0.0
      %146 = vmatpush1.msra.mxu0 %v102
      %147 = vmatprep.subr.mxu0 0.0
      %148 = vmatpush1.msra.mxu0 %v101
      %149 = vmatprep.subr.mxu0 0.0
      %150 = vmatpush2.msra.mxu0 0.0
      %151 = vmatprep.subr.mxu0 0.0
      %152 = vmatpush2.msra.mxu0 0.0
      %153 = vmatprep.subr.mxu0 0.0
      %154 = vmatpush2.msra.mxu0 0.0
      %155 = vmatprep.subr.mxu0 0.0
      %156 = vmatpush2.msra.mxu0 0.0
      %157 = vmatprep.subr.mxu0 0.0
      %158 = vmatpush2.msra.mxu0 0.0
      %159 = vmatprep.subr.mxu0 0.0
      %160 = vmatpush2.msra.mxu0 0.0
      %161 = vmatprep.subr.mxu0 0.0
      %162 = vmatpush2.msra.mxu0 0.0
      %163 = vmatprep.subr.mxu0 0.0
      %164 = vmatpush2.msra.mxu0 0.0
      %165 = vmatprep.subr.mxu0 0.0
      %166 = vmatpush2.msra.mxu0 0.0
      %167 = vmatprep.subr.mxu0 0.0
      %168 = vmatpush2.msra.mxu0 0.0
      %169 = vmatprep.subr.mxu0 0.0
      %170 = vmatpush2.msra.mxu0 0.0
      %171 = vmatprep.subr.mxu0 0.0
      %172 = vmatpush2.msra.mxu0 0.0
      %173 = vmatprep.subr.mxu0 0.0
      %174 = vmatpush2.msra.mxu0 0.0
      %175 = vmatprep.subr.mxu0 0.0
      %176 = vmatpush2.msra.mxu0 0.0
      %177 = vmatprep.subr.mxu0 0.0
      %178 = vmatpush2.msra.mxu0 0.0
      %179 = vmatprep.subr.mxu0 0.0
      %180 = vmatpush2.msra.mxu0 0.0
      %181 = vmatprep.mubr.f32.mxu0 0.0
      %182 = vmatmul.mubr.f32.gmra.mxu0 %v100
      %v183 = vpop.f32.mrf.mxu0
      %v184 = vadd.f32 0.0, %v183
      %v185 = vpop.f32.mrf.mxu0
      %186 = vdwg.mxu0
      %v187 = vmul.f32 %v100, %v100
      %188 = vmatprep.subr.mxu0 0.0
      %189 = vmatpush1.msra.mxu0 %v116
      %190 = vmatprep.subr.mxu0 0.0
      %191 = vmatpush1.msra.mxu0 %v115
      %192 = vmatprep.subr.mxu0 0.0
      %193 = vmatpush1.msra.mxu0 %v114
      %194 = vmatprep.subr.mxu0 0.0
      %195 = vmatpush1.msra.mxu0 %v113
      %196 = vmatprep.subr.mxu0 0.0
      %197 = vmatpush1.msra.mxu0 %v112
      %198 = vmatprep.subr.mxu0 0.0
      %199 = vmatpush1.msra.mxu0 %v111
      %200 = vmatprep.subr.mxu0 0.0
      %201 = vmatpush1.msra.mxu0 %v110
      %202 = vmatprep.subr.mxu0 0.0
      %203 = vmatpush1.msra.mxu0 %v109
      %204 = vmatprep.subr.mxu0 0.0
      %205 = vmatpush1.msra.mxu0 %v108
      %206 = vmatprep.subr.mxu0 0.0
      %207 = vmatpush1.msra.mxu0 %v107
      %208 = vmatprep.subr.mxu0 0.0
      %209 = vmatpush1.msra.mxu0 %v106
      %210 = vmatprep.subr.mxu0 0.0
      %211 = vmatpush1.msra.mxu0 %v105
      %212 = vmatprep.subr.mxu0 0.0
      %213 = vmatpush1.msra.mxu0 %v104
      %214 = vmatprep.subr.mxu0 0.0
      %215 = vmatpush1.msra.mxu0 %v103
      %216 = vmatprep.subr.mxu0 0.0
      %217 = vmatpush1.msra.mxu0 %v102
      %218 = vmatprep.subr.mxu0 0.0
      %219 = vmatpush1.msra.mxu0 %v101
      %220 = vmatprep.subr.mxu0 0.0
      %221 = vmatpush2.msra.mxu0 0.0
      %222 = vmatprep.subr.mxu0 0.0
      %223 = vmatpush2.msra.mxu0 0.0
      %224 = vmatprep.subr.mxu0 0.0
      %225 = vmatpush2.msra.mxu0 0.0
      %226 = vmatprep.subr.mxu0 0.0
      %227 = vmatpush2.msra.mxu0 0.0
      %228 = vmatprep.subr.mxu0 0.0
      %229 = vmatpush2.msra.mxu0 0.0
      %230 = vmatprep.subr.mxu0 0.0
      %231 = vmatpush2.msra.mxu0 0.0
      %232 = vmatprep.subr.mxu0 0.0
      %233 = vmatpush2.msra.mxu0 0.0
      %234 = vmatprep.subr.mxu0 0.0
      %235 = vmatpush2.msra.mxu0 0.0
      %236 = vmatprep.subr.mxu0 0.0
      %237 = vmatpush2.msra.mxu0 0.0
      %238 = vmatprep.subr.mxu0 0.0
      %239 = vmatpush2.msra.mxu0 0.0
      %240 = vmatprep.subr.mxu0 0.0
      %241 = vmatpush2.msra.mxu0 0.0
      %242 = vmatprep.subr.mxu0 0.0
      %243 = vmatpush2.msra.mxu0 0.0
      %244 = vmatprep.subr.mxu0 0.0
      %245 = vmatpush2.msra.mxu0 0.0
      %246 = vmatprep.subr.mxu0 0.0
      %247 = vmatpush2.msra.mxu0 0.0
      %248 = vmatprep.subr.mxu0 0.0
      %249 = vmatpush2.msra.mxu0 0.0
      %250 = vmatprep.subr.mxu0 0.0
      %251 = vmatpush2.msra.mxu0 0.0
      %252 = vmatprep.mubr.f32.mxu0 0.0
      %253 = vmatmul.mubr.f32.gmra.mxu0 %v187
      %v254 = vpop.f32.mrf.mxu0
      %v255 = vadd.f32 0.0, %v254
      %v256 = vpop.f32.mrf.mxu0
      %257 = vdwg.mxu0
      %v258 = vmul.f32 %v184, %v184
      %v259 = vsub.f32 %v255, %v258
      %v260 = vmax.f32 %v259, 0.0
      %v261 = vadd.f32 %v260, 1e-05
      %v262 = vrsqrt.pop %v261
      %v263 = vld [vmem:[%s4] sm:$0xff]
      %v264 = vld [vmem:[%s4 + $0x8] sm:$0xff]
      %v265 = vld [vmem:[%s4 + $0x10] sm:$0xff]
      %v266 = vld [vmem:[%s4 + $0x18] sm:$0xff]
      %v268 = vsel %vm45, %v262, 0
      %270 = vmatprep.subr.mxu0 0.0
      %271 = vmatpush1.msra.mxu0 0.0
      %272 = vmatprep.subr.mxu0 0.0
      %273 = vmatpush1.msra.mxu0 0.0
      %274 = vmatprep.subr.mxu0 0.0
      %275 = vmatpush1.msra.mxu0 0.0
      %276 = vmatprep.subr.mxu0 0.0
      %277 = vmatpush1.msra.mxu0 0.0
      %278 = vmatprep.subr.mxu0 0.0
      %279 = vmatpush1.msra.mxu0 0.0
      %280 = vmatprep.subr.mxu0 0.0
      %281 = vmatpush1.msra.mxu0 0.0
      %282 = vmatprep.subr.mxu0 0.0
      %283 = vmatpush1.msra.mxu0 0.0
      %284 = vmatprep.subr.mxu0 0.0
      %285 = vmatpush1.msra.mxu0 0.0
      %286 = vmatprep.subr.mxu0 0.0
      %287 = vmatpush1.msra.mxu0 0.0
      %288 = vmatprep.subr.mxu0 0.0
      %289 = vmatpush1.msra.mxu0 0.0
      %290 = vmatprep.subr.mxu0 0.0
      %291 = vmatpush1.msra.mxu0 0.0
      %292 = vmatprep.subr.mxu0 0.0
      %293 = vmatpush1.msra.mxu0 0.0
      %294 = vmatprep.subr.mxu0 0.0
      %295 = vmatpush1.msra.mxu0 %v266
      %296 = vmatprep.subr.mxu0 0.0
      %297 = vmatpush1.msra.mxu0 %v265
      %298 = vmatprep.subr.mxu0 0.0
      %299 = vmatpush1.msra.mxu0 %v264
      %300 = vmatprep.subr.mxu0 0.0
      %301 = vmatpush1.msra.mxu0 %v263
      %302 = vmatprep.subr.mxu0 0.0
      %303 = vmatpush2.msra.mxu0 0.0
      %304 = vmatprep.subr.mxu0 0.0
      %305 = vmatpush2.msra.mxu0 0.0
      %306 = vmatprep.subr.mxu0 0.0
      %307 = vmatpush2.msra.mxu0 0.0
      %308 = vmatprep.subr.mxu0 0.0
      %309 = vmatpush2.msra.mxu0 0.0
      %310 = vmatprep.subr.mxu0 0.0
      %311 = vmatpush2.msra.mxu0 0.0
      %312 = vmatprep.subr.mxu0 0.0
      %313 = vmatpush2.msra.mxu0 0.0
      %314 = vmatprep.subr.mxu0 0.0
      %315 = vmatpush2.msra.mxu0 0.0
      %316 = vmatprep.subr.mxu0 0.0
      %317 = vmatpush2.msra.mxu0 0.0
      %318 = vmatprep.subr.mxu0 0.0
      %319 = vmatpush2.msra.mxu0 0.0
      %320 = vmatprep.subr.mxu0 0.0
      %321 = vmatpush2.msra.mxu0 0.0
      %322 = vmatprep.subr.mxu0 0.0
      %323 = vmatpush2.msra.mxu0 0.0
      %324 = vmatprep.subr.mxu0 0.0
      %325 = vmatpush2.msra.mxu0 0.0
      %326 = vmatprep.subr.mxu0 0.0
      %327 = vmatpush2.msra.mxu0 0.0
      %328 = vmatprep.subr.mxu0 0.0
      %329 = vmatpush2.msra.mxu0 0.0
      %330 = vmatprep.subr.mxu0 0.0
      %331 = vmatpush2.msra.mxu0 0.0
      %332 = vmatprep.subr.mxu0 0.0
      %333 = vmatpush2.msra.mxu0 0.0
      %334 = vmatprep.mubr.f32.mxu0 0.0
      %335 = vmatmul.mubr.f32.gmra.mxu0 %v268
      %v336 = vpop.f32.mrf.mxu0
      %v337 = vadd.f32 0.0, %v336
      %v338 = vpop.f32.mrf.mxu0
      %339 = vdwg.mxu0
      %v340 = vmul.f32 %v184, %v262
      %v341 = vsub.f32 0.0, %v340
      %v343 = vsel %vm45, %v341, 0
      %345 = vmatprep.subr.mxu0 0.0
      %346 = vmatpush1.msra.mxu0 0.0
      %347 = vmatprep.subr.mxu0 0.0
      %348 = vmatpush1.msra.mxu0 0.0
      %349 = vmatprep.subr.mxu0 0.0
      %350 = vmatpush1.msra.mxu0 0.0
      %351 = vmatprep.subr.mxu0 0.0
      %352 = vmatpush1.msra.mxu0 0.0
      %353 = vmatprep.subr.mxu0 0.0
      %354 = vmatpush1.msra.mxu0 0.0
      %355 = vmatprep.subr.mxu0 0.0
      %356 = vmatpush1.msra.mxu0 0.0
      %357 = vmatprep.subr.mxu0 0.0
      %358 = vmatpush1.msra.mxu0 0.0
      %359 = vmatprep.subr.mxu0 0.0
      %360 = vmatpush1.msra.mxu0 0.0
      %361 = vmatprep.subr.mxu0 0.0
      %362 = vmatpush1.msra.mxu0 0.0
      %363 = vmatprep.subr.mxu0 0.0
      %364 = vmatpush1.msra.mxu0 0.0
      %365 = vmatprep.subr.mxu0 0.0
      %366 = vmatpush1.msra.mxu0 0.0
      %367 = vmatprep.subr.mxu0 0.0
      %368 = vmatpush1.msra.mxu0 0.0
      %369 = vmatprep.subr.mxu0 0.0
      %370 = vmatpush1.msra.mxu0 %v266
      %371 = vmatprep.subr.mxu0 0.0
      %372 = vmatpush1.msra.mxu0 %v265
      %373 = vmatprep.subr.mxu0 0.0
      %374 = vmatpush1.msra.mxu0 %v264
      %375 = vmatprep.subr.mxu0 0.0
      %376 = vmatpush1.msra.mxu0 %v263
      %377 = vmatprep.subr.mxu0 0.0
      %378 = vmatpush2.msra.mxu0 0.0
      %379 = vmatprep.subr.mxu0 0.0
      %380 = vmatpush2.msra.mxu0 0.0
      %381 = vmatprep.subr.mxu0 0.0
      %382 = vmatpush2.msra.mxu0 0.0
      %383 = vmatprep.subr.mxu0 0.0
      %384 = vmatpush2.msra.mxu0 0.0
      %385 = vmatprep.subr.mxu0 0.0
      %386 = vmatpush2.msra.mxu0 0.0
      %387 = vmatprep.subr.mxu0 0.0
      %388 = vmatpush2.msra.mxu0 0.0
      %389 = vmatprep.subr.mxu0 0.0
      %390 = vmatpush2.msra.mxu0 0.0
      %391 = vmatprep.subr.mxu0 0.0
      %392 = vmatpush2.msra.mxu0 0.0
      %393 = vmatprep.subr.mxu0 0.0
      %394 = vmatpush2.msra.mxu0 0.0
      %395 = vmatprep.subr.mxu0 0.0
      %396 = vmatpush2.msra.mxu0 0.0
      %397 = vmatprep.subr.mxu0 0.0
      %398 = vmatpush2.msra.mxu0 0.0
      %399 = vmatprep.subr.mxu0 0.0
      %400 = vmatpush2.msra.mxu0 0.0
      %401 = vmatprep.subr.mxu0 0.0
      %402 = vmatpush2.msra.mxu0 0.0
      %403 = vmatprep.subr.mxu0 0.0
      %404 = vmatpush2.msra.mxu0 0.0
      %405 = vmatprep.subr.mxu0 0.0
      %406 = vmatpush2.msra.mxu0 0.0
      %407 = vmatprep.subr.mxu0 0.0
      %408 = vmatpush2.msra.mxu0 0.0
      %409 = vmatprep.mubr.f32.mxu0 0.0
      %410 = vmatmul.mubr.f32.gmra.mxu0 %v343
      %v411 = vpop.f32.mrf.mxu0
      %v412 = vadd.f32 0.0, %v411
      %v413 = vpop.f32.mrf.mxu0
      %414 = vdwg.mxu0
      %v415 = vmul.f32 %v100, %v337
      %v416 = vadd.f32 %v415, %v412
      %v417 = vld [vmem:[%s2 + $0x1] sm:$0x1]
      %v418 = vlaneseq
      %v419 = vshrl.u32 %v418, 7
      %v420 = vsub.s32 0, %v419
      %v421 = vrot.slane %v417, %v420
      %v422 = vadd.f32 %v416, %v421
      %v423 = vmax.f32 %v422, 0.0
      %424 = vst [vmem:[#allocation3] sm:$0xff] %v423
    $region29: #{tpu_custom_call.1} parent=1 // pred_fallthru
      _
    // Predicated region
    $region30: #{tpu_custom_call.1} parent=1 // pred_check
      _
    $region31: #{tpu_custom_call.1} parent=1 // pred_check_branch
      %426 = sbr.rel (0) target = $region33
    $region32: #{tpu_custom_call.1} parent=1 // pred_region
      %s428 = ssub.s32 128, 128
      %429 = vsyncadd [#allocation4], %s428
      %s431 = sshll.u32 [#allocation3], 4
      %s432 = int_to_ptr.vmem [resolvable:$true] %s431
      %434 = dma.vmem_to_hbm [thread:$0]  %s432, 128, %s5, [#allocation4]
    $region33: #{tpu_custom_call.1} parent=1 // pred_fallthru
      _
    // Predicated region
    $region34: #{tpu_custom_call.1} parent=1 // pred_check
      _
    $region35: #{tpu_custom_call.1} parent=1 // pred_check_branch
      %436 = sbr.rel (0) target = $region37
    $region36: #{tpu_custom_call.1} parent=1 // pred_region
      %437 = dma.done [#allocation4], 128
    $region37: #{tpu_custom_call.1} parent=1 // pred_fallthru
      _
    %438 = vsyncpa [#allocation4], 1

</llo_original>
